<compile_context>
chip_gen: v7x
topology: tpu7x:2x2x1
jax: 0.10.0
libtpu: 0.0.40
codegen_flags: <defaults>
</compile_context>

<pallas_src>
import math

import jax
import jax.numpy as jnp
from jax.experimental import pallas as pl
from jax.experimental.pallas import tpu as pltpu

# ArcFace hyper-parameters (match the PyTorch module defaults)
S = 30.0
M = 0.5
COS_M = math.cos(M)
SIN_M = math.sin(M)
TH = math.cos(math.pi - M)
MM = math.sin(math.pi - M) * M
EPS = 1e-12  # F.normalize default eps


def _round_up(x, m):
    return (x + m - 1) // m * m


def arccos_kernel(feat_ref, w_ref, lab_ref, out_ref, w_n_ref):
    # ---- Normalize the weight tile once per class tile ---------------------
    # The weight block index is constant across the inner (batch) grid axis,
    # so it stays VMEM-resident; cache its normalized form in scratch and
    # reuse it for every batch tile of this class tile.
    @pl.when(pl.program_id(1) == 0)
    def _():
        w = w_ref[...]                                    # [TC, D] bf16
        w32 = w.astype(jnp.float32)
        w_inv = jax.lax.rsqrt(
            jnp.maximum(jnp.sum(w32 * w32, axis=1, keepdims=True), EPS * EPS))
        w_n_ref[...] = w * w_inv.astype(jnp.bfloat16)     # bf16 in vregs

    # ---- Normalize the feature tile (f32 reduction, bf16 product) ----------
    f = feat_ref[...]                                     # [TB, D] bf16
    f32 = f.astype(jnp.float32)
    f_inv = jax.lax.rsqrt(
        jnp.maximum(jnp.sum(f32 * f32, axis=1, keepdims=True), EPS * EPS))
    f_n = f * f_inv.astype(jnp.bfloat16)                  # [TB, D] bf16

    # cosine[b, c] = <f_n[b, :], w_n[c, :]> -- contract last dims directly
    # (no transpose / relayout); bf16 MXU operands, f32 accumulation.
    cosine = jax.lax.dot_general(
        f_n, w_n_ref[...],
        dimension_numbers=(((1,), (1,)), ((), ())),
        preferred_element_type=jnp.float32)               # [TB, TC] f32

    tb, tc = cosine.shape
    lab = lab_ref[...]                                    # [TB, 1] int32
    local_lab = lab - pl.program_id(0) * tc               # label index within tile
    is_label = jax.lax.broadcasted_iota(jnp.int32, (tb, tc), 1) == local_lab

    # Margin math only on the label column ([TB, 1] instead of [TB, TC]).
    # If the label is not in this class tile, target_cos is 0 but never used.
    target_cos = jnp.sum(jnp.where(is_label, cosine, 0.0), axis=1, keepdims=True)
    sine = jnp.sqrt(jnp.clip(1.0 - target_cos * target_cos, 0.0, 1.0))
    phi = target_cos * COS_M - sine * SIN_M
    phi = jnp.where(target_cos > TH, phi, target_cos - MM)

    out_ref[...] = (jnp.where(is_label, phi, cosine) * S).astype(out_ref.dtype)


def arccos_forward(features, weight, labels, *, tile_b=256, tile_c=2048,
                   out_dtype=jnp.float32,
                   vmem_budget_bytes=40 * 1024 * 1024):
    """features: [B, D], weight: [C, D] (PyTorch layout), labels: [B] int."""
    B, D = features.shape
    C, D2 = weight.shape
    assert D == D2
    out_isz = jnp.dtype(out_dtype).itemsize

    def ws_bytes(tb, tc):
        # double-buffered blocks + the normalized-weight scratch
        return (tc * D * 2 * 2        # weight blocks (bf16, 2 buffers)
                + tc * D * 2          # normalized-weight scratch (bf16)
                + tb * D * 2 * 2      # feature blocks (bf16, 2 buffers)
                + tb * 4 * 2          # label blocks (i32, 2 buffers)
                + tb * tc * out_isz * 2)  # output blocks (2 buffers)

    # Batch tiling: whole (sublane-padded) batch if it fits in one tile,
    # otherwise a 256-row tile (fills the 256-wide MXU on v6e/v7x).
    b_pad = _round_up(B, 8)
    tb = b_pad if b_pad <= tile_b else tile_b

    # Class tiling: lane-dense (multiple of 128), shrunk until the working set
    # fits the VMEM budget (v7x has only 64 MiB physical / 32 MiB scoped).
    c_pad = _round_up(C, 128)
    tc = min(tile_c, c_pad)
    while tc > 128 and ws_bytes(tb, tc) > vmem_budget_bytes:
        tc = max(128, (tc // 2) // 128 * 128)
    while tb > 8 and ws_bytes(tb, tc) > vmem_budget_bytes:
        tb = max(8, (tb // 2) // 8 * 8)
    b_pad = _round_up(_round_up(B, 8), tb)
    c_pad = _round_up(c_pad, tc)
    # TODO(synk): for very large D on v7x, add a K grid axis ("arbitrary") with
    # an f32 accumulator scratch instead of holding the full (tc, D) weight slab.

    # Keep >=2 class tiles when possible so the 'parallel' axis can be sharded
    # across the two TensorCores on v7x (same total weight DMA either way).
    if c_pad // tc == 1 and c_pad >= 256:
        tc = (c_pad // 2) // 128 * 128
        c_pad = _round_up(c_pad, tc)

    # bf16 on the DMA path; pad only when actually needed.
    # TODO(synk): in a real training step, pre-cast/pre-pad the class weight
    # once outside the per-step hot path instead of on every call.
    feats_bf = features.astype(jnp.bfloat16)
    if b_pad != B:
        feats_bf = jnp.pad(feats_bf, ((0, b_pad - B), (0, 0)))
    weight_bf = weight.astype(jnp.bfloat16)
    if c_pad != C:
        weight_bf = jnp.pad(weight_bf, ((0, c_pad - C), (0, 0)))
    labels_i = labels.astype(jnp.int32)
    if b_pad != B:
        labels_i = jnp.pad(labels_i, (0, b_pad - B))
    labels_i = labels_i.reshape(b_pad, 1)

    # Batch is the innermost (fastest) grid axis -> the weight block index is
    # constant across it, so the largest operand stays VMEM-resident and its
    # normalization is computed once per class tile.
    grid = (c_pad // tc, b_pad // tb)
    vmem_limit = min(48 * 1024 * 1024,
                     max(32 * 1024 * 1024, ws_bytes(tb, tc) + 4 * 1024 * 1024))

    out = pl.pallas_call(
        arccos_kernel,
        out_shape=jax.ShapeDtypeStruct((b_pad, c_pad), out_dtype),
        grid=grid,
        in_specs=[
            pl.BlockSpec((tb, D), lambda ci, bi: (bi, 0)),   # features
            pl.BlockSpec((tc, D), lambda ci, bi: (ci, 0)),   # weight (resident over bi)
            pl.BlockSpec((tb, 1), lambda ci, bi: (bi, 0)),   # labels
        ],
        out_specs=pl.BlockSpec((tb, tc), lambda ci, bi: (bi, ci)),
        scratch_shapes=[pltpu.VMEM((tc, D), jnp.bfloat16)],  # normalized-weight cache
        compiler_params=pltpu.CompilerParams(
            dimension_semantics=("parallel", "arbitrary"),
            vmem_limit_bytes=vmem_limit),
    )(feats_bf, weight_bf, labels_i)

    return out[:B, :C]


if __name__ == "__main__":
    # Small, deterministic example: batch=8, in_features=32, out_features=16
    B, IN_F, OUT_F = 8, 32, 16
    key = jax.random.PRNGKey(0)
    k_feat, k_w, k_lab = jax.random.split(key, 3)

    features = jax.random.normal(k_feat, (B, IN_F), dtype=jnp.float32)
    # kaiming_uniform_(a=sqrt(5)) on [out, in] => U(-1/sqrt(fan_in), 1/sqrt(fan_in))
    bound = 1.0 / math.sqrt(IN_F)
    weight = jax.random.uniform(
        k_w, (OUT_F, IN_F), dtype=jnp.float32, minval=-bound, maxval=bound)
    labels = jax.random.randint(k_lab, (B,), 0, OUT_F, dtype=jnp.int32)

    out = arccos_forward(features, weight, labels)
    jax.block_until_ready(out)

    # Pure-JAX reference (same math as the PyTorch module). The normalization /
    # matmul operands mirror the kernel's intentional bf16 MXU dtype choice.
    f_bf = features.astype(jnp.bfloat16)
    w_bf = weight.astype(jnp.bfloat16)
    f32 = f_bf.astype(jnp.float32)
    w32 = w_bf.astype(jnp.float32)
    f_inv = jax.lax.rsqrt(
        jnp.maximum(jnp.sum(f32 * f32, axis=1, keepdims=True), EPS * EPS))
    w_inv = jax.lax.rsqrt(
        jnp.maximum(jnp.sum(w32 * w32, axis=1, keepdims=True), EPS * EPS))
    f_n = f_bf * f_inv.astype(jnp.bfloat16)
    w_n = w_bf * w_inv.astype(jnp.bfloat16)
    cos = jnp.dot(f_n, w_n.T, preferred_element_type=jnp.float32)
    sin = jnp.sqrt(jnp.clip(1.0 - cos * cos, 0.0, 1.0))
    phi = jnp.where(cos > TH, cos * COS_M - sin * SIN_M, cos - MM)
    oh = jax.nn.one_hot(labels, OUT_F, dtype=jnp.float32)
    ref = (oh * phi + (1.0 - oh) * cos) * S

    assert out.shape == (B, OUT_F)
    err = jnp.max(jnp.abs(out - ref))
    assert jnp.allclose(out, ref, atol=1e-2, rtol=1e-3), f"mismatch vs reference: {err}"

    print("KERNEL_OK")
</pallas_src>

<mosaic_0001>
module attributes {stable_mosaic.version = 11 : i64} {
  func.func @arccos_kernel(%arg0: i32, %arg1: i32, %arg2: memref<8x32xbf16, #tpu.memory_space<vmem>>, %arg3: memref<128x32xbf16, #tpu.memory_space<vmem>>, %arg4: memref<8x1xi32, #tpu.memory_space<vmem>>, %arg5: memref<8x128xf32, #tpu.memory_space<vmem>>, %arg6: memref<128x32xbf16, #tpu.memory_space<vmem>>) attributes {dimension_semantics = [#tpu.dimension_semantics<parallel>, #tpu.dimension_semantics<arbitrary>], iteration_bounds = array<i64: 1, 1>, scalar_prefetch = 0 : i64, scratch_operands = 1 : i64, tpu.core_type = #tpu.core_type<tc>, window_params = [{transform_indices = @transform_0, window_bounds = array<i64: 8, 32>}, {transform_indices = @transform_1, window_bounds = array<i64: 128, 32>}, {transform_indices = @transform_2, window_bounds = array<i64: 8, 1>}, {transform_indices = @transform_3, window_bounds = array<i64: 8, 128>}]} {
    %c0_i32 = arith.constant 0 : i32
    %0 = arith.cmpi eq, %arg1, %c0_i32 : i32
    %1 = arith.extui %0 : i1 to i32
    %c0_i32_0 = arith.constant 0 : i32
    %2 = arith.cmpi ne, %1, %c0_i32_0 : i32
    scf.if %2 {
      %c0_20 = arith.constant 0 : index
      %c0_21 = arith.constant 0 : index
      %51 = vector.load %arg3[%c0_20, %c0_21] : memref<128x32xbf16, #tpu.memory_space<vmem>>, vector<128x32xbf16>
      %52 = arith.extf %51 : vector<128x32xbf16> to vector<128x32xf32>
      %53 = arith.mulf %52, %52 : vector<128x32xf32>
      %cst_22 = arith.constant dense<0.000000e+00> : vector<128xf32>
      %54 = vector.multi_reduction <add>, %53, %cst_22 [1] : vector<128x32xf32> to vector<128xf32>
      %55 = vector.shape_cast %54 : vector<128xf32> to vector<128x1xf32>
      %cst_23 = arith.constant 1.000000e-24 : f32
      %56 = vector.broadcast %cst_23 : f32 to vector<128x1xf32>
      %57 = arith.maximumf %55, %56 : vector<128x1xf32>
      %58 = math.rsqrt %57 : vector<128x1xf32>
      %59 = arith.truncf %58 : vector<128x1xf32> to vector<128x1xbf16>
      %60 = vector.broadcast %59 : vector<128x1xbf16> to vector<128x32xbf16>
      %61 = arith.mulf %51, %60 : vector<128x32xbf16>
      %c0_24 = arith.constant 0 : index
      %c0_25 = arith.constant 0 : index
      %62 = vector.load %arg6[%c0_24, %c0_25] : memref<128x32xbf16, #tpu.memory_space<vmem>>, vector<128x32xbf16>
      tpu.vector_store %arg6[%c0_24, %c0_25], %61 {strides = array<i32>} : memref<128x32xbf16, #tpu.memory_space<vmem>>, vector<128x32xbf16>,
    } else {
    }
    %c0 = arith.constant 0 : index
    %c0_1 = arith.constant 0 : index
    %3 = vector.load %arg2[%c0, %c0_1] : memref<8x32xbf16, #tpu.memory_space<vmem>>, vector<8x32xbf16>
    %4 = arith.extf %3 : vector<8x32xbf16> to vector<8x32xf32>
    %5 = arith.mulf %4, %4 : vector<8x32xf32>
    %cst = arith.constant dense<0.000000e+00> : vector<8xf32>
    %6 = vector.multi_reduction <add>, %5, %cst [1] : vector<8x32xf32> to vector<8xf32>
    %7 = vector.shape_cast %6 : vector<8xf32> to vector<8x1xf32>
    %cst_2 = arith.constant 1.000000e-24 : f32
    %8 = vector.broadcast %cst_2 : f32 to vector<8x1xf32>
    %9 = arith.maximumf %7, %8 : vector<8x1xf32>
    %10 = math.rsqrt %9 : vector<8x1xf32>
    %11 = arith.truncf %10 : vector<8x1xf32> to vector<8x1xbf16>
    %12 = vector.broadcast %11 : vector<8x1xbf16> to vector<8x32xbf16>
    %13 = arith.mulf %3, %12 : vector<8x32xbf16>
    %c0_3 = arith.constant 0 : index
    %c0_4 = arith.constant 0 : index
    %14 = vector.load %arg6[%c0_3, %c0_4] : memref<128x32xbf16, #tpu.memory_space<vmem>>, vector<128x32xbf16>
    %cst_5 = arith.constant dense<0.000000e+00> : vector<8x128xf32>
    %15 = tpu.matmul %13, %14, %cst_5 {dimension_numbers = #tpu.dot_dimension_numbers<[1], [1], [0], [0], [0, 0, 1, 0], [], []>} : vector<8x32xbf16>, vector<128x32xbf16>, vector<8x128xf32> -> vector<8x128xf32>
    %c0_6 = arith.constant 0 : index
    %c0_7 = arith.constant 0 : index
    %16 = vector.load %arg4[%c0_6, %c0_7] : memref<8x1xi32, #tpu.memory_space<vmem>>, vector<8x1xi32>
    %c128_i32 = arith.constant 128 : i32
    %17 = arith.muli %arg0, %c128_i32 : i32
    %18 = vector.broadcast %17 : i32 to vector<8x1xi32>
    %19 = arith.subi %16, %18 : vector<8x1xi32>
    %20 = tpu.iota {dimensions = array<i32: 1>} : vector<8x128xi32>
    %21 = vector.broadcast %19 : vector<8x1xi32> to vector<8x128xi32>
    %22 = arith.cmpi eq, %20, %21 : vector<8x128xi32>
    %cst_8 = arith.constant 0.000000e+00 : f32
    %23 = vector.broadcast %cst_8 : f32 to vector<8x128xf32>
    %24 = arith.select %22, %15, %23 : vector<8x128xi1>, vector<8x128xf32>
    %cst_9 = arith.constant dense<0.000000e+00> : vector<8xf32>
    %25 = vector.multi_reduction <add>, %24, %cst_9 [1] : vector<8x128xf32> to vector<8xf32>
    %26 = vector.shape_cast %25 : vector<8xf32> to vector<8x1xf32>
    %27 = arith.mulf %26, %26 : vector<8x1xf32>
    %cst_10 = arith.constant 1.000000e+00 : f32
    %28 = vector.broadcast %cst_10 : f32 to vector<8x1xf32>
    %29 = arith.subf %28, %27 : vector<8x1xf32>
    %cst_11 = arith.constant 0.000000e+00 : f32
    %cst_12 = arith.constant 1.000000e+00 : f32
    %30 = vector.broadcast %cst_11 : f32 to vector<8x1xf32>
    %31 = arith.maximumf %30, %29 : vector<8x1xf32>
    %32 = vector.broadcast %cst_12 : f32 to vector<8x1xf32>
    %33 = arith.minimumf %32, %31 : vector<8x1xf32>
    %34 = math.sqrt %33 : vector<8x1xf32>
    %cst_13 = arith.constant 0.87758255 : f32
    %35 = vector.broadcast %cst_13 : f32 to vector<8x1xf32>
    %36 = arith.mulf %26, %35 : vector<8x1xf32>
    %cst_14 = arith.constant 0.47942555 : f32
    %37 = vector.broadcast %cst_14 : f32 to vector<8x1xf32>
    %38 = arith.mulf %34, %37 : vector<8x1xf32>
    %39 = arith.subf %36, %38 : vector<8x1xf32>
    %cst_15 = arith.constant -0.87758255 : f32
    %40 = vector.broadcast %cst_15 : f32 to vector<8x1xf32>
    %41 = arith.cmpf ogt, %26, %40 : vector<8x1xf32>
    %cst_16 = arith.constant 0.239712775 : f32
    %42 = vector.broadcast %cst_16 : f32 to vector<8x1xf32>
    %43 = arith.subf %26, %42 : vector<8x1xf32>
    %44 = arith.select %41, %39, %43 : vector<8x1xi1>, vector<8x1xf32>
    %45 = vector.shape_cast %44 : vector<8x1xf32> to vector<8x1xf32>
    %46 = vector.broadcast %45 : vector<8x1xf32> to vector<8x128xf32>
    %47 = arith.select %22, %46, %15 : vector<8x128xi1>, vector<8x128xf32>
    %cst_17 = arith.constant 3.000000e+01 : f32
    %48 = vector.broadcast %cst_17 : f32 to vector<8x128xf32>
    %49 = arith.mulf %47, %48 : vector<8x128xf32>
    %c0_18 = arith.constant 0 : index
    %c0_19 = arith.constant 0 : index
    %50 = vector.load %arg5[%c0_18, %c0_19] : memref<8x128xf32, #tpu.memory_space<vmem>>, vector<8x128xf32>
    tpu.vector_store %arg5[%c0_18, %c0_19], %49 {strides = array<i32>} : memref<8x128xf32, #tpu.memory_space<vmem>>, vector<8x128xf32>,
    return
  }
  func.func @transform_0(%arg0: i32, %arg1: i32) -> (i32, i32) {
    %c0_i32 = arith.constant 0 : i32
    %c0_i32_0 = arith.constant 0 : i32
    return %arg1, %c0_i32 : i32, i32
  }
  func.func @transform_1(%arg0: i32, %arg1: i32) -> (i32, i32) {
    %c0_i32 = arith.constant 0 : i32
    %c0_i32_0 = arith.constant 0 : i32
    return %arg0, %c0_i32 : i32, i32
  }
  func.func @transform_2(%arg0: i32, %arg1: i32) -> (i32, i32) {
    %c0_i32 = arith.constant 0 : i32
    %c0_i32_0 = arith.constant 0 : i32
    return %arg1, %c0_i32 : i32, i32
  }
  func.func @transform_3(%arg0: i32, %arg1: i32) -> (i32, i32) {
    %c0_i32 = arith.constant 0 : i32
    return %arg1, %arg0 : i32, i32
  }
}

</mosaic_0001>

<llo_original>
// kernel: tpu_custom_call.1
$region0: #{tpu_custom_call.1}
  #allocation0 [shape = 'u32[]', space=smem, size = 0x4, offset = 0x4, fixed_abs, tag = 'smem constant byte address 0x4 - core index']
  #allocation1 [shape = 'u32[144,128]{1,0:T(1,128)}', space=vmem, size = 0x12000, scoped, tag = 'internal scratch']
  #allocation2 [shape = 'bf16[128,32]{1,0:T(16,128)(2,1)}', space=vmem, size = 0x8000, scoped, tag = 'scratch operand']
  %s0 = inlined_call_operand.vmem [shape: bf16[8,32], index: 0, kind: input, shape index: {}]
  %s1 = inlined_call_operand.vmem [shape: bf16[128,32], index: 1, kind: input, shape index: {}]
  %s2 = inlined_call_operand.vmem [shape: s32[8,1], index: 2, kind: input, shape index: {}]
  %s3 = inlined_call_operand.hbm [shape: f32[8,128], index: 3, kind: output, shape index: {}]
  %s4 = sld [smem:[#allocation0]]
  $region26: #{tpu_custom_call.1} parent=0
    _
  %s6 = ssub.s32 1, %s4
  %s7 = scalar_select 0, %s6, %s4
  $region1: #{tpu_custom_call.1} parent=0
    #allocation3 [shape = 'u8[4096]{0}', space=vmem, size = 0x1000, scoped, tag = 'output window, operand 0, single buffered']
    #allocation4 [shape = 's32[1]{0}', space=sflag, size = 0x4, scoped, tag = 'scoped memory for tpu_custom_call.1']
    %8 = vsyncpa [#allocation4], 0
    // Predicated region
    $region2: #{tpu_custom_call.1} parent=1 // pred_check
      _
    $region3: #{tpu_custom_call.1} parent=1 // pred_check_branch
      %10 = sbr.rel (0) target = $region5
    $region4: #{tpu_custom_call.1} parent=1 // pred_region
      _
    $region5: #{tpu_custom_call.1} parent=1 // pred_fallthru
      _
    // Predicated region
    $region6: #{tpu_custom_call.1} parent=1 // pred_check
      _
    $region7: #{tpu_custom_call.1} parent=1 // pred_check_branch
      %12 = sbr.rel (0) target = $region9
    $region8: #{tpu_custom_call.1} parent=1 // pred_region
      _
    $region9: #{tpu_custom_call.1} parent=1 // pred_fallthru
      _
    // Predicated region
    $region10: #{tpu_custom_call.1} parent=1 // pred_check
      _
    $region11: #{tpu_custom_call.1} parent=1 // pred_check_branch
      %14 = sbr.rel (0) target = $region13
    $region12: #{tpu_custom_call.1} parent=1 // pred_region
      _
    $region13: #{tpu_custom_call.1} parent=1 // pred_fallthru
      _
    %p16 = scmp.eq.s32.totalorder 0, 0
    // Predicated region
    $region14: #{tpu_custom_call.1} parent=1 // pred_check
      %p17 = pneg %p16
    $region15: #{tpu_custom_call.1} parent=1 // pred_check_branch
      %19 = sbr.rel (%p17) target = $region17
    $region16: #{tpu_custom_call.1} parent=1 // pred_region
      %v20 = vld [vmem:[%s1] sm:$0xf]
      %v21 = vld [vmem:[%s1 + $0x4] sm:$0xf]
      %v22 = vld [vmem:[%s1 + $0x8] sm:$0xf]
      %v23 = vld [vmem:[%s1 + $0xc] sm:$0xf]
      %v24 = vld [vmem:[%s1 + $0x10] sm:$0xf]
      %v25 = vld [vmem:[%s1 + $0x14] sm:$0xf]
      %v26 = vld [vmem:[%s1 + $0x18] sm:$0xf]
      %v27 = vld [vmem:[%s1 + $0x1c] sm:$0xf]
      %v28 = vld [vmem:[%s1 + $0x20] sm:$0xf]
      %v29 = vld [vmem:[%s1 + $0x24] sm:$0xf]
      %v30 = vld [vmem:[%s1 + $0x28] sm:$0xf]
      %v31 = vld [vmem:[%s1 + $0x2c] sm:$0xf]
      %v32 = vld [vmem:[%s1 + $0x30] sm:$0xf]
      %v33 = vld [vmem:[%s1 + $0x34] sm:$0xf]
      %v34 = vld [vmem:[%s1 + $0x38] sm:$0xf]
      %v35 = vld [vmem:[%s1 + $0x3c] sm:$0xf]
      %v36 = vunpack.c.l.bf16 %v20
      %v37 = vunpack.c.l.bf16 %v21
      %v38 = vunpack.c.l.bf16 %v22
      %v39 = vunpack.c.l.bf16 %v23
      %v40 = vunpack.c.l.bf16 %v24
      %v41 = vunpack.c.l.bf16 %v25
      %v42 = vunpack.c.l.bf16 %v26
      %v43 = vunpack.c.l.bf16 %v27
      %v44 = vunpack.c.l.bf16 %v28
      %v45 = vunpack.c.l.bf16 %v29
      %v46 = vunpack.c.l.bf16 %v30
      %v47 = vunpack.c.l.bf16 %v31
      %v48 = vunpack.c.l.bf16 %v32
      %v49 = vunpack.c.l.bf16 %v33
      %v50 = vunpack.c.l.bf16 %v34
      %v51 = vunpack.c.l.bf16 %v35
      %v52 = vmul.f32 %v36, %v36
      %v53 = vmul.f32 %v37, %v37
      %v54 = vmul.f32 %v38, %v38
      %v55 = vmul.f32 %v39, %v39
      %v56 = vmul.f32 %v40, %v40
      %v57 = vmul.f32 %v41, %v41
      %v58 = vmul.f32 %v42, %v42
      %v59 = vmul.f32 %v43, %v43
      %v60 = vmul.f32 %v44, %v44
      %v61 = vmul.f32 %v45, %v45
      %v62 = vmul.f32 %v46, %v46
      %v63 = vmul.f32 %v47, %v47
      %v64 = vmul.f32 %v48, %v48
      %v65 = vmul.f32 %v49, %v49
      %v66 = vmul.f32 %v50, %v50
      %v67 = vmul.f32 %v51, %v51
      %vm68 = vcmask 261120
      %v69 = vsel %vm68, %v52, 0.0
      %70 = vadd.xlane.f32.xlu0 %v69
      %v71 = vpop.xlane.xlu0 %70
      %v72 = vsel %vm68, %v53, 0.0
      %73 = vadd.xlane.f32.xlu0 %v72
      %v74 = vpop.xlane.xlu0 %73
      %v75 = vsel %vm68, %v54, 0.0
      %76 = vadd.xlane.f32.xlu0 %v75
      %v77 = vpop.xlane.xlu0 %76
      %v78 = vsel %vm68, %v55, 0.0
      %79 = vadd.xlane.f32.xlu0 %v78
      %v80 = vpop.xlane.xlu0 %79
      %v81 = vsel %vm68, %v56, 0.0
      %82 = vadd.xlane.f32.xlu0 %v81
      %v83 = vpop.xlane.xlu0 %82
      %v84 = vsel %vm68, %v57, 0.0
      %85 = vadd.xlane.f32.xlu0 %v84
      %v86 = vpop.xlane.xlu0 %85
      %v87 = vsel %vm68, %v58, 0.0
      %88 = vadd.xlane.f32.xlu0 %v87
      %v89 = vpop.xlane.xlu0 %88
      %v90 = vsel %vm68, %v59, 0.0
      %91 = vadd.xlane.f32.xlu0 %v90
      %v92 = vpop.xlane.xlu0 %91
      %v93 = vsel %vm68, %v60, 0.0
      %94 = vadd.xlane.f32.xlu0 %v93
      %v95 = vpop.xlane.xlu0 %94
      %v96 = vsel %vm68, %v61, 0.0
      %97 = vadd.xlane.f32.xlu0 %v96
      %v98 = vpop.xlane.xlu0 %97
      %v99 = vsel %vm68, %v62, 0.0
      %100 = vadd.xlane.f32.xlu0 %v99
      %v101 = vpop.xlane.xlu0 %100
      %v102 = vsel %vm68, %v63, 0.0
      %103 = vadd.xlane.f32.xlu0 %v102
      %v104 = vpop.xlane.xlu0 %103
      %v105 = vsel %vm68, %v64, 0.0
      %106 = vadd.xlane.f32.xlu0 %v105
      %v107 = vpop.xlane.xlu0 %106
      %v108 = vsel %vm68, %v65, 0.0
      %109 = vadd.xlane.f32.xlu0 %v108
      %v110 = vpop.xlane.xlu0 %109
      %v111 = vsel %vm68, %v66, 0.0
      %112 = vadd.xlane.f32.xlu0 %v111
      %v113 = vpop.xlane.xlu0 %112
      %v114 = vsel %vm68, %v67, 0.0
      %115 = vadd.xlane.f32.xlu0 %v114
      %v116 = vpop.xlane.xlu0 %115
      %v117 = vmax.f32 %v71, 1e-24
      %v118 = vmax.f32 %v74, 1e-24
      %v119 = vmax.f32 %v77, 1e-24
      %v120 = vmax.f32 %v80, 1e-24
      %v121 = vmax.f32 %v83, 1e-24
      %v122 = vmax.f32 %v86, 1e-24
      %v123 = vmax.f32 %v89, 1e-24
      %v124 = vmax.f32 %v92, 1e-24
      %v125 = vmax.f32 %v95, 1e-24
      %v126 = vmax.f32 %v98, 1e-24
      %v127 = vmax.f32 %v101, 1e-24
      %v128 = vmax.f32 %v104, 1e-24
      %v129 = vmax.f32 %v107, 1e-24
      %v130 = vmax.f32 %v110, 1e-24
      %v131 = vmax.f32 %v113, 1e-24
      %v132 = vmax.f32 %v116, 1e-24
      %v133 = vrsqrt.pop %v117
      %v134 = vrsqrt.pop %v118
      %v135 = vrsqrt.pop %v119
      %v136 = vrsqrt.pop %v120
      %v137 = vrsqrt.pop %v121
      %v138 = vrsqrt.pop %v122
      %v139 = vrsqrt.pop %v123
      %v140 = vrsqrt.pop %v124
      %v141 = vrsqrt.pop %v125
      %v142 = vrsqrt.pop %v126
      %v143 = vrsqrt.pop %v127
      %v144 = vrsqrt.pop %v128
      %v145 = vrsqrt.pop %v129
      %v146 = vrsqrt.pop %v130
      %v147 = vrsqrt.pop %v131
      %v148 = vrsqrt.pop %v132
      %v149 = vpack.c.bf16 %v134, %v133
      %v150 = vpack.c.bf16 %v136, %v135
      %v151 = vpack.c.bf16 %v138, %v137
      %v152 = vpack.c.bf16 %v140, %v139
      %v153 = vpack.c.bf16 %v142, %v141
      %v154 = vpack.c.bf16 %v144, %v143
      %v155 = vpack.c.bf16 %v146, %v145
      %v156 = vpack.c.bf16 %v148, %v147
      %v166 = vunpack.c.l.s4 839922192
      %v167 = vunpack.c.0.s8 %v166
      %v168 = vlaneseq
      %v169 = vshrl.u32 %v168, 7
      %v170 = vsub.s32 %v167, %v169
      %v171 = vrot.slane %v149, %v170
      %v173 = vunpack.c.l.s4 1985246804
      %v174 = vunpack.c.0.s8 %v173
      %v175 = vlaneseq
      %v176 = vshrl.u32 %v175, 7
      %v177 = vsub.s32 %v174, %v176
      %v178 = vrot.slane %v149, %v177
      %v180 = vunpack.c.l.s4 839922192
      %v181 = vunpack.c.0.s8 %v180
      %v182 = vlaneseq
      %v183 = vshrl.u32 %v182, 7
      %v184 = vsub.s32 %v181, %v183
      %v185 = vrot.slane %v150, %v184
      %v187 = vunpack.c.l.s4 1985246804
      %v188 = vunpack.c.0.s8 %v187
      %v189 = vlaneseq
      %v190 = vshrl.u32 %v189, 7
      %v191 = vsub.s32 %v188, %v190
      %v192 = vrot.slane %v150, %v191
      %v194 = vunpack.c.l.s4 839922192
      %v195 = vunpack.c.0.s8 %v194
      %v196 = vlaneseq
      %v197 = vshrl.u32 %v196, 7
      %v198 = vsub.s32 %v195, %v197
      %v199 = vrot.slane %v151, %v198
      %v201 = vunpack.c.l.s4 1985246804
      %v202 = vunpack.c.0.s8 %v201
      %v203 = vlaneseq
      %v204 = vshrl.u32 %v203, 7
      %v205 = vsub.s32 %v202, %v204
      %v206 = vrot.slane %v151, %v205
      %v208 = vunpack.c.l.s4 839922192
      %v209 = vunpack.c.0.s8 %v208
      %v210 = vlaneseq
      %v211 = vshrl.u32 %v210, 7
      %v212 = vsub.s32 %v209, %v211
      %v213 = vrot.slane %v152, %v212
      %v215 = vunpack.c.l.s4 1985246804
      %v216 = vunpack.c.0.s8 %v215
      %v217 = vlaneseq
      %v218 = vshrl.u32 %v217, 7
      %v219 = vsub.s32 %v216, %v218
      %v220 = vrot.slane %v152, %v219
      %v222 = vunpack.c.l.s4 839922192
      %v223 = vunpack.c.0.s8 %v222
      %v224 = vlaneseq
      %v225 = vshrl.u32 %v224, 7
      %v226 = vsub.s32 %v223, %v225
      %v227 = vrot.slane %v153, %v226
      %v229 = vunpack.c.l.s4 1985246804
      %v230 = vunpack.c.0.s8 %v229
      %v231 = vlaneseq
      %v232 = vshrl.u32 %v231, 7
      %v233 = vsub.s32 %v230, %v232
      %v234 = vrot.slane %v153, %v233
      %v236 = vunpack.c.l.s4 839922192
      %v237 = vunpack.c.0.s8 %v236
      %v238 = vlaneseq
      %v239 = vshrl.u32 %v238, 7
      %v240 = vsub.s32 %v237, %v239
      %v241 = vrot.slane %v154, %v240
      %v243 = vunpack.c.l.s4 1985246804
      %v244 = vunpack.c.0.s8 %v243
      %v245 = vlaneseq
      %v246 = vshrl.u32 %v245, 7
      %v247 = vsub.s32 %v244, %v246
      %v248 = vrot.slane %v154, %v247
      %v250 = vunpack.c.l.s4 839922192
      %v251 = vunpack.c.0.s8 %v250
      %v252 = vlaneseq
      %v253 = vshrl.u32 %v252, 7
      %v254 = vsub.s32 %v251, %v253
      %v255 = vrot.slane %v155, %v254
      %v257 = vunpack.c.l.s4 1985246804
      %v258 = vunpack.c.0.s8 %v257
      %v259 = vlaneseq
      %v260 = vshrl.u32 %v259, 7
      %v261 = vsub.s32 %v258, %v260
      %v262 = vrot.slane %v155, %v261
      %v264 = vunpack.c.l.s4 839922192
      %v265 = vunpack.c.0.s8 %v264
      %v266 = vlaneseq
      %v267 = vshrl.u32 %v266, 7
      %v268 = vsub.s32 %v265, %v267
      %v269 = vrot.slane %v156, %v268
      %v271 = vunpack.c.l.s4 1985246804
      %v272 = vunpack.c.0.s8 %v271
      %v273 = vlaneseq
      %v274 = vshrl.u32 %v273, 7
      %v275 = vsub.s32 %v272, %v274
      %v276 = vrot.slane %v156, %v275
      %v293 = vmul.bf16 %v20, %v171
      %v294 = vmul.bf16 %v21, %v178
      %v295 = vmul.bf16 %v22, %v185
      %v296 = vmul.bf16 %v23, %v192
      %v297 = vmul.bf16 %v24, %v199
      %v298 = vmul.bf16 %v25, %v206
      %v299 = vmul.bf16 %v26, %v213
      %v300 = vmul.bf16 %v27, %v220
      %v301 = vmul.bf16 %v28, %v227
      %v302 = vmul.bf16 %v29, %v234
      %v303 = vmul.bf16 %v30, %v241
      %v304 = vmul.bf16 %v31, %v248
      %v305 = vmul.bf16 %v32, %v255
      %v306 = vmul.bf16 %v33, %v262
      %v307 = vmul.bf16 %v34, %v269
      %v308 = vmul.bf16 %v35, %v276
      %v325 = vunpack.c.l.b16 %v293
      %v326 = vunpack.c.l.b16 %v294
      %v327 = vunpack.c.l.b16 %v295
      %v328 = vunpack.c.l.b16 %v296
      %v329 = vunpack.c.l.b16 %v297
      %v330 = vunpack.c.l.b16 %v298
      %v331 = vunpack.c.l.b16 %v299
      %v332 = vunpack.c.l.b16 %v300
      %v333 = vunpack.c.l.b16 %v301
      %v334 = vunpack.c.l.b16 %v302
      %v335 = vunpack.c.l.b16 %v303
      %v336 = vunpack.c.l.b16 %v304
      %v337 = vunpack.c.l.b16 %v305
      %v338 = vunpack.c.l.b16 %v306
      %v339 = vunpack.c.l.b16 %v307
      %v340 = vunpack.c.l.b16 %v308
      %v341 = vpack.c.b16 %v326, %v325
      %v342 = vpack.c.b16 %v328, %v327
      %v343 = vpack.c.b16 %v330, %v329
      %v344 = vpack.c.b16 %v332, %v331
      %v345 = vpack.c.b16 %v334, %v333
      %v346 = vpack.c.b16 %v336, %v335
      %v347 = vpack.c.b16 %v338, %v337
      %v348 = vpack.c.b16 %v340, %v339
      %357 = vst.msk [vmem:[#allocation2] sm:$0xff] %vm68, %v341
      %358 = vst.msk [vmem:[#allocation2 + $0x8] sm:$0xff] %vm68, %v342
      %359 = vst.msk [vmem:[#allocation2 + $0x10] sm:$0xff] %vm68, %v343
      %360 = vst.msk [vmem:[#allocation2 + $0x18] sm:$0xff] %vm68, %v344
      %361 = vst.msk [vmem:[#allocation2 + $0x20] sm:$0xff] %vm68, %v345
      %362 = vst.msk [vmem:[#allocation2 + $0x28] sm:$0xff] %vm68, %v346
      %363 = vst.msk [vmem:[#allocation2 + $0x30] sm:$0xff] %vm68, %v347
      %364 = vst.msk [vmem:[#allocation2 + $0x38] sm:$0xff] %vm68, %v348
    $region17: #{tpu_custom_call.1} parent=1 // pred_fallthru
      _
    %v365 = vld [vmem:[%s0] sm:$0xf]
    %v366 = vunpack.c.l.bf16 %v365
    %v367 = vmul.f32 %v366, %v366
    %vm368 = vcmask 261120
    %v369 = vsel %vm368, %v367, 0.0
    %370 = vadd.xlane.f32.xlu0 %v369
    %v371 = vpop.xlane.xlu0 %370
    %v372 = vmax.f32 %v371, 1e-24
    %v373 = vrsqrt.pop %v372
    %v374 = vpack.c.bf16 %v373, %v373
    %v375 = vmul.bf16 %v365, %v374
    %v376 = vld [vmem:[#allocation2] sm:$0xff]
    %v377 = vld [vmem:[#allocation2 + $0x8] sm:$0xff]
    %v378 = vld [vmem:[#allocation2 + $0x10] sm:$0xff]
    %v379 = vld [vmem:[#allocation2 + $0x18] sm:$0xff]
    %v380 = vld [vmem:[#allocation2 + $0x20] sm:$0xff]
    %v381 = vld [vmem:[#allocation2 + $0x28] sm:$0xff]
    %v382 = vld [vmem:[#allocation2 + $0x30] sm:$0xff]
    %v383 = vld [vmem:[#allocation2 + $0x38] sm:$0xff]
    %v385 = vsel %vm368, %v375, 0
    %v388 = vsel %vm368, %v376, 0
    %v391 = vsel %vm368, %v377, 0
    %v394 = vsel %vm368, %v378, 0
    %v397 = vsel %vm368, %v379, 0
    %v400 = vsel %vm368, %v380, 0
    %v403 = vsel %vm368, %v381, 0
    %v406 = vsel %vm368, %v382, 0
    %v409 = vsel %vm368, %v383, 0
    %411 = vmatprep.subr.bf16.mxu0 0
    %412 = vmatpush1.bf16.xpose.msra.mxu0 %v388
    %413 = vmatprep.subr.bf16.mxu0 0
    %414 = vmatpush1.bf16.xpose.msra.mxu0 %v391
    %415 = vmatprep.subr.bf16.mxu0 0
    %416 = vmatpush1.bf16.xpose.msra.mxu0 %v394
    %417 = vmatprep.subr.bf16.mxu0 0
    %418 = vmatpush1.bf16.xpose.msra.mxu0 %v397
    %419 = vmatprep.subr.bf16.mxu0 0
    %420 = vmatpush1.bf16.xpose.msra.mxu0 %v400
    %421 = vmatprep.subr.bf16.mxu0 0
    %422 = vmatpush1.bf16.xpose.msra.mxu0 %v403
    %423 = vmatprep.subr.bf16.mxu0 0
    %424 = vmatpush1.bf16.xpose.msra.mxu0 %v406
    %425 = vmatprep.subr.bf16.mxu0 0
    %426 = vmatpush1.bf16.xpose.msra.mxu0 %v409
    %427 = vmatprep.subr.bf16.mxu0 0
    %428 = vmatpush1.bf16.xpose.msra.mxu0 0
    %429 = vmatprep.subr.bf16.mxu0 0
    %430 = vmatpush1.bf16.xpose.msra.mxu0 0
    %431 = vmatprep.subr.bf16.mxu0 0
    %432 = vmatpush1.bf16.xpose.msra.mxu0 0
    %433 = vmatprep.subr.bf16.mxu0 0
    %434 = vmatpush1.bf16.xpose.msra.mxu0 0
    %435 = vmatprep.subr.bf16.mxu0 0
    %436 = vmatpush1.bf16.xpose.msra.mxu0 0
    %437 = vmatprep.subr.bf16.mxu0 0
    %438 = vmatpush1.bf16.xpose.msra.mxu0 0
    %439 = vmatprep.subr.bf16.mxu0 0
    %440 = vmatpush1.bf16.xpose.msra.mxu0 0
    %441 = vmatprep.subr.bf16.mxu0 0
    %442 = vmatpush1.bf16.xpose.msra.mxu0 0
    %443 = vmatprep.mubr.bf16.mxu0 0
    %444 = vmatmul.mubr.bf16.gmra.mrb[0].mxu0 %v385
    %v445 = vpop.f32.mrb[0].mxu0
    %v446 = vadd.f32 0.0, %v445
    %v447 = vpop.f32.mrb[0].mxu0
    %v448 = vpop.f32.mrb[0].mxu0
    %v449 = vpop.f32.mrb[0].mxu0
    %450 = vdwg.mxu0
    %v451 = vld [vmem:[%s2] sm:$0xff]
    %s452 = smul.u32 0, 128
    %v453 = vstv %s452
    %v454 = vsub.s32 %v451, %v453
    %v455 = vlaneseq
    %v456 = vand.u32 %v455, 127
    %457 = vset.pattern.permute.xlu0 0
    %458 = vperm.xlu0 %457, %v454
    %v459 = vpop.permute.xlu0 %458
    %vm460 = vcmp.eq.s32.totalorder %v456, %v459
    %v461 = vsel %vm460, %v446, 0.0
    %462 = vadd.xlane.f32.xlu0 %v461
    %v463 = vpop.xlane.xlu0 %462
    %v464 = vmul.f32 %v463, %v463
    %v465 = vsub.f32 1.0, %v464
    %v466 = vmax.f32 %v465, 0.0
    %v467 = vmin.f32 %v466, 1.0
    %v468 = vrsqrt.pop %v467
    %v469 = vmul.f32 %v467, %v468
    %vm470 = vcmp.eq.f32.partialorder %v467, inf
    %v471 = vsel %vm470, %v467, %v469
    %vm472 = vcmp.eq.f32.partialorder %v467, 0.0
    %v473 = vand.u32 %v467, 2147483648
    %v474 = vsel %vm472, %v473, %v471
    %v475 = vmul.f32 %v463, 0.87758255
    %v476 = vmul.f32 %v474, 0.47942555
    %v477 = vsub.f32 %v475, %v476
    %vm478 = vcmp.gt.f32.partialorder %v463, -0.87758255
    %v479 = vsub.f32 %v463, 0.23971277
    %v480 = vsel %vm478, %v477, %v479
    %v481 = vsel %vm460, %v480, %v446
    %v482 = vmul.f32 %v481, 30.0
    %483 = vst [vmem:[#allocation3] sm:$0xff] %v482
    // Predicated region
    $region18: #{tpu_custom_call.1} parent=1 // pred_check
      _
    $region19: #{tpu_custom_call.1} parent=1 // pred_check_branch
      %485 = sbr.rel (0) target = $region21
    $region20: #{tpu_custom_call.1} parent=1 // pred_region
      %s487 = ssub.s32 128, 128
      %488 = vsyncadd [#allocation4], %s487
      %s490 = sshll.u32 [#allocation3], 4
      %s491 = int_to_ptr.vmem [resolvable:$true] %s490
      %493 = dma.vmem_to_hbm [thread:$0]  %s491, 128, %s3, [#allocation4]
    $region21: #{tpu_custom_call.1} parent=1 // pred_fallthru
      _
    // Predicated region
    $region22: #{tpu_custom_call.1} parent=1 // pred_check
      _
    $region23: #{tpu_custom_call.1} parent=1 // pred_check_branch
      %495 = sbr.rel (0) target = $region25
    $region24: #{tpu_custom_call.1} parent=1 // pred_region
      %496 = dma.done [#allocation4], 128
    $region25: #{tpu_custom_call.1} parent=1 // pred_fallthru
      _
    %497 = vsyncpa [#allocation4], 1

</llo_original>
